<compile_context>
chip_gen: v7x
topology: tpu7x:2x2x1
jax: 0.10.0
libtpu: 0.0.40
codegen_flags: <defaults>
</compile_context>

<pallas_src>
import functools

import jax
import jax.numpy as jnp
import numpy as np
from jax.experimental import pallas as pl
from jax.experimental.pallas import tpu as pltpu

_LANE = 128


def _round_up(a, b):
    return (a + b - 1) // b * b


def _snn_conv_kernel(l_ref, x_ref, w_ref, o_ref, slab_ref, *, K, F_in):
    """Single-invocation SNN filter.

    l_ref    : (M_p, M_p)          Laplacian (VMEM, whole, lane-aligned)
    x_ref    : (M_p, F_in)         input features (VMEM, whole)
    w_ref    : (KF_p, F_out_p)     flattened + zero-padded weights (VMEM, whole)
    o_ref    : (M_p, F_out_p)      output (lane-dense)
    slab_ref : (M_p, KF_p)         VMEM scratch: [x | Lx | ... | L^{K-1}x | 0-pad]
    """
    # Zero the slab once so the lane-padding columns [K*F_in, KF_p) are exactly
    # zero (they meet zero rows of w_ref anyway, but this also guards against
    # stale NaN/Inf in scratch VMEM).
    slab_ref[...] = jnp.zeros_like(slab_ref)

    # ---- Phase 1: Laplacian powers, statically unrolled over K.
    # Carry the current power as a traced value; only *store* each column once.
    prev = x_ref[...].astype(jnp.float32)
    slab_ref[:, 0:F_in] = prev
    for k in range(1, K):
        cur = jnp.dot(l_ref[...], prev, preferred_element_type=jnp.float32)
        slab_ref[:, k * F_in : (k + 1) * F_in] = cur
        prev = cur

    # ---- Phase 2: one GEMM over the combined, lane-aligned contraction.
    o_ref[...] = jnp.dot(
        slab_ref[...], w_ref[...], preferred_element_type=jnp.float32
    ).astype(o_ref.dtype)


def make_snn_conv(L, W):
    """Build the SNN-conv forward.  The constant Laplacian and the weights are
    padded / flattened exactly once here (hoisted out of the per-call path)."""
    M = L.shape[0]
    K, F_in, F_out = W.shape

    M_p = _round_up(max(M, _LANE), _LANE)        # lane-aligned rows AND L columns
    F_out_p = _round_up(F_out, _LANE)            # lane-dense output
    KF = K * F_in
    KF_p = _round_up(KF, _LANE)                  # lane-aligned contraction depth

    # One-time padding of the constant operands (zeros do not change the result).
    L_p = jnp.pad(jnp.asarray(L, jnp.float32), ((0, M_p - M), (0, M_p - M)))
    W_p = jnp.pad(jnp.asarray(W, jnp.float32), ((0, 0), (0, 0), (0, F_out_p - F_out)))
    # (K, F_in, F_out_p) -> (K*F_in, F_out_p): row k*F_in + i == W[k, i, :],
    # matching the slab column ordering [x | Lx | ... | L^{K-1}x]; then pad the
    # contraction depth to KF_p with zero rows.
    W_flat = jnp.pad(W_p.reshape(KF, F_out_p), ((0, KF_p - KF), (0, 0)))
    L_p = jax.device_put(L_p)
    W_flat = jax.device_put(W_flat)

    kernel = functools.partial(_snn_conv_kernel, K=K, F_in=F_in)

    # Advisory cost estimate: K-1 power matmuls + one big GEMM.
    flops = 2.0 * M_p * M_p * F_in * (K - 1) + 2.0 * M_p * KF_p * F_out_p
    bytes_accessed = 4 * (M_p * M_p + M_p * F_in + KF_p * F_out_p + M_p * F_out_p)
    cost = pl.CostEstimate(
        flops=int(flops), transcendentals=0, bytes_accessed=int(bytes_accessed)
    )

    # Scoped VMEM sized from the actual resident buffers (L + x + W + slab + out),
    # with 2x headroom; floor at 32 MiB (>= v5e/v6e defaults), cap at 64 MiB so
    # the value is valid on v7x as well.
    needed = 4 * (M_p * M_p + M_p * F_in + KF_p * F_out_p + M_p * KF_p + M_p * F_out_p)
    vmem_limit = int(min(max(2 * needed, 32 << 20), 64 << 20))

    call = pl.pallas_call(
        kernel,
        out_shape=jax.ShapeDtypeStruct((M_p, F_out_p), jnp.float32),
        in_specs=[
            pl.BlockSpec(memory_space=pltpu.MemorySpace.VMEM),  # L_p (whole)
            pl.BlockSpec(memory_space=pltpu.MemorySpace.VMEM),  # x_p
            pl.BlockSpec(memory_space=pltpu.MemorySpace.VMEM),  # W_flat
        ],
        out_specs=pl.BlockSpec(memory_space=pltpu.MemorySpace.VMEM),
        scratch_shapes=[
            pltpu.VMEM((M_p, KF_p), jnp.float32),  # power slab, f32 carry
        ],
        compiler_params=pltpu.CompilerParams(vmem_limit_bytes=vmem_limit),
        cost_estimate=cost,
    )

    @jax.jit
    def _forward(x, L_pad, W_pad):
        # Only the tiny per-call x pad lives inside the jitted forward.
        x_p = jnp.pad(x.astype(jnp.float32), ((0, M_p - x.shape[0]), (0, 0)))
        y_p = call(L_pad, x_p, W_pad)
        return y_p[:M, :F_out].astype(x.dtype)

    def forward(x):
        return _forward(x, L_p, W_flat)

    return forward


def snn_conv_reference(x, L, W):
    """Pure-JAX reference matching the PyTorch forward exactly."""
    K = W.shape[0]
    xk = x
    y = xk @ W[0]
    for k in range(1, K):
        xk = L @ xk
        y = y + xk @ W[k]
    return y


def init_params(key, K, F_in, F_out):
    """Deterministic xavier_uniform_(gain=calculate_gain('relu')) for W (K, F_in, F_out)."""
    gain = np.sqrt(2.0)  # nn.init.calculate_gain('relu')
    # PyTorch fan computation for a 3-D tensor (K, F_in, F_out):
    #   fan_in  = shape[1] * prod(shape[2:]) = F_in * F_out
    #   fan_out = shape[0] * prod(shape[2:]) = K * F_out
    fan_in = F_in * F_out
    fan_out = K * F_out
    bound = gain * np.sqrt(6.0 / (fan_in + fan_out))
    W = jax.random.uniform(
        key, (K, F_in, F_out), dtype=jnp.float32, minval=-bound, maxval=bound
    )
    return W


if __name__ == "__main__":
    # Small shapes consistent with the module: M simplices, F_in -> F_out, order K.
    M, F_in, F_out, K = 64, 16, 32, 3

    key = jax.random.PRNGKey(0)
    kx, kl, kw = jax.random.split(key, 3)

    x = jax.random.normal(kx, (M, F_in), dtype=jnp.float32)

    # Synthetic symmetric "Laplacian"-like operator (fixed buffer in the module).
    A = jax.random.normal(kl, (M, M), dtype=jnp.float32) * 0.05
    L = 0.5 * (A + A.T)

    W = init_params(kw, K, F_in, F_out)

    snn_conv = make_snn_conv(L, W)   # pads L / flattens W exactly once
    y = snn_conv(x)
    y = jax.block_until_ready(y)

    y_ref = snn_conv_reference(x, L, W)
    np.testing.assert_allclose(np.asarray(y), np.asarray(y_ref), rtol=1e-5, atol=1e-5)

    print("KERNEL_OK")
</pallas_src>

<mosaic_0001>
module attributes {stable_mosaic.version = 11 : i64} {
  func.func @_snn_conv_kernel(%arg0: memref<128x128xf32, #tpu.memory_space<vmem>>, %arg1: memref<128x16xf32, #tpu.memory_space<vmem>>, %arg2: memref<128x128xf32, #tpu.memory_space<vmem>>, %arg3: memref<128x128xf32, #tpu.memory_space<vmem>>, %arg4: memref<128x128xf32, #tpu.memory_space<vmem>>) attributes {dimension_semantics = [], scalar_prefetch = 0 : i64, scratch_operands = 1 : i64, tpu.core_type = #tpu.core_type<tc>} {
    %cst = arith.constant 0.000000e+00 : f32
    %0 = vector.broadcast %cst : f32 to vector<128x128xf32>
    %c0 = arith.constant 0 : index
    %c0_0 = arith.constant 0 : index
    %1 = vector.load %arg4[%c0, %c0_0] : memref<128x128xf32, #tpu.memory_space<vmem>>, vector<128x128xf32>
    tpu.vector_store %arg4[%c0, %c0_0], %0 {strides = array<i32>} : memref<128x128xf32, #tpu.memory_space<vmem>>, vector<128x128xf32>,
    %c0_1 = arith.constant 0 : index
    %c0_2 = arith.constant 0 : index
    %2 = vector.load %arg1[%c0_1, %c0_2] : memref<128x16xf32, #tpu.memory_space<vmem>>, vector<128x16xf32>
    %c0_3 = arith.constant 0 : index
    %c0_4 = arith.constant 0 : index
    %3 = vector.load %arg4[%c0_3, %c0_4] : memref<128x128xf32, #tpu.memory_space<vmem>>, vector<128x16xf32>
    tpu.vector_store %arg4[%c0_3, %c0_4], %2 {strides = array<i32>} : memref<128x128xf32, #tpu.memory_space<vmem>>, vector<128x16xf32>,
    %c0_5 = arith.constant 0 : index
    %c0_6 = arith.constant 0 : index
    %4 = vector.load %arg0[%c0_5, %c0_6] : memref<128x128xf32, #tpu.memory_space<vmem>>, vector<128x128xf32>
    %cst_7 = arith.constant dense<0.000000e+00> : vector<128x16xf32>
    %5 = tpu.matmul %4, %2, %cst_7 {dimension_numbers = #tpu.dot_dimension_numbers<[1], [0], [0], [1], [0, 0, 1, 1], [], []>} : vector<128x128xf32>, vector<128x16xf32>, vector<128x16xf32> -> vector<128x16xf32>
    %c0_8 = arith.constant 0 : index
    %c16 = arith.constant 16 : index
    %6 = vector.load %arg4[%c0_8, %c16] : memref<128x128xf32, #tpu.memory_space<vmem>>, vector<128x16xf32>
    tpu.vector_store %arg4[%c0_8, %c16], %5 {strides = array<i32>} : memref<128x128xf32, #tpu.memory_space<vmem>>, vector<128x16xf32>,
    %c0_9 = arith.constant 0 : index
    %c0_10 = arith.constant 0 : index
    %7 = vector.load %arg0[%c0_9, %c0_10] : memref<128x128xf32, #tpu.memory_space<vmem>>, vector<128x128xf32>
    %cst_11 = arith.constant dense<0.000000e+00> : vector<128x16xf32>
    %8 = tpu.matmul %7, %5, %cst_11 {dimension_numbers = #tpu.dot_dimension_numbers<[1], [0], [0], [1], [0, 0, 1, 1], [], []>} : vector<128x128xf32>, vector<128x16xf32>, vector<128x16xf32> -> vector<128x16xf32>
    %c0_12 = arith.constant 0 : index
    %c32 = arith.constant 32 : index
    %9 = vector.load %arg4[%c0_12, %c32] : memref<128x128xf32, #tpu.memory_space<vmem>>, vector<128x16xf32>
    tpu.vector_store %arg4[%c0_12, %c32], %8 {strides = array<i32>} : memref<128x128xf32, #tpu.memory_space<vmem>>, vector<128x16xf32>,
    %c0_13 = arith.constant 0 : index
    %c0_14 = arith.constant 0 : index
    %10 = vector.load %arg4[%c0_13, %c0_14] : memref<128x128xf32, #tpu.memory_space<vmem>>, vector<128x128xf32>
    %c0_15 = arith.constant 0 : index
    %c0_16 = arith.constant 0 : index
    %11 = vector.load %arg2[%c0_15, %c0_16] : memref<128x128xf32, #tpu.memory_space<vmem>>, vector<128x128xf32>
    %cst_17 = arith.constant dense<0.000000e+00> : vector<128x128xf32>
    %12 = tpu.matmul %10, %11, %cst_17 {dimension_numbers = #tpu.dot_dimension_numbers<[1], [0], [0], [1], [0, 0, 1, 1], [], []>} : vector<128x128xf32>, vector<128x128xf32>, vector<128x128xf32> -> vector<128x128xf32>
    %c0_18 = arith.constant 0 : index
    %c0_19 = arith.constant 0 : index
    %13 = vector.load %arg3[%c0_18, %c0_19] : memref<128x128xf32, #tpu.memory_space<vmem>>, vector<128x128xf32>
    tpu.vector_store %arg3[%c0_18, %c0_19], %12 {strides = array<i32>} : memref<128x128xf32, #tpu.memory_space<vmem>>, vector<128x128xf32>,
    return
  }
}

</mosaic_0001>

<llo_original>
// kernel: _forward.1
$region0: #{_forward.1}
  #allocation0 [shape = 'u32[]', space=smem, size = 0x4, offset = 0x4, fixed_abs, tag = 'smem constant byte address 0x4 - core index']
  #allocation1 [shape = 'u32[144,128]{1,0:T(1,128)}', space=vmem, size = 0x12000, scoped, tag = 'internal scratch']
  #allocation2 [shape = 'f32[128,128]{1,0:T(8,128)}', space=vmem, size = 0x10000, scoped, tag = 'scratch operand']
  %s0 = inlined_call_operand.vmem [shape: f32[128,128], index: 0, kind: input, shape index: {}]
  %s1 = inlined_call_operand.vmem [shape: f32[128,16], index: 1, kind: input, shape index: {}]
  %s2 = inlined_call_operand.vmem [shape: f32[128,128], index: 2, kind: input, shape index: {}]
  %s3 = inlined_call_operand.vmem [shape: f32[128,128], index: 3, kind: output, shape index: {}]
  %s4 = sld [smem:[#allocation0]]
  $region22: #{_forward.1} parent=0
    _
  %s6 = ssub.s32 1, %s4
  %s7 = scalar_select 0, %s6, %s4
  // Predicated region
  $region2: #{_forward.1} parent=0 // pred_check
    _
  $region3: #{_forward.1} parent=0 // pred_check_branch
    %9 = sbr.rel (0) target = $region5
  $region4: #{_forward.1} parent=0 // pred_region
    _
  $region5: #{_forward.1} parent=0 // pred_fallthru
    _
  // Predicated region
  $region6: #{_forward.1} parent=0 // pred_check
    _
  $region7: #{_forward.1} parent=0 // pred_check_branch
    %11 = sbr.rel (0) target = $region9
  $region8: #{_forward.1} parent=0 // pred_region
    _
  $region9: #{_forward.1} parent=0 // pred_fallthru
    _
  // Predicated region
  $region10: #{_forward.1} parent=0 // pred_check
    _
  $region11: #{_forward.1} parent=0 // pred_check_branch
    %13 = sbr.rel (0) target = $region13
  $region12: #{_forward.1} parent=0 // pred_region
    _
  $region13: #{_forward.1} parent=0 // pred_fallthru
    _
  %14 = vst [vmem:[#allocation2] sm:$0xff] 0.0
  %15 = vst [vmem:[#allocation2 + $0x8] sm:$0xff] 0.0
  %16 = vst [vmem:[#allocation2 + $0x10] sm:$0xff] 0.0
  %17 = vst [vmem:[#allocation2 + $0x18] sm:$0xff] 0.0
  %18 = vst [vmem:[#allocation2 + $0x20] sm:$0xff] 0.0
  %19 = vst [vmem:[#allocation2 + $0x28] sm:$0xff] 0.0
  %20 = vst [vmem:[#allocation2 + $0x30] sm:$0xff] 0.0
  %21 = vst [vmem:[#allocation2 + $0x38] sm:$0xff] 0.0
  %22 = vst [vmem:[#allocation2 + $0x40] sm:$0xff] 0.0
  %23 = vst [vmem:[#allocation2 + $0x48] sm:$0xff] 0.0
  %24 = vst [vmem:[#allocation2 + $0x50] sm:$0xff] 0.0
  %25 = vst [vmem:[#allocation2 + $0x58] sm:$0xff] 0.0
  %26 = vst [vmem:[#allocation2 + $0x60] sm:$0xff] 0.0
  %27 = vst [vmem:[#allocation2 + $0x68] sm:$0xff] 0.0
  %28 = vst [vmem:[#allocation2 + $0x70] sm:$0xff] 0.0
  %29 = vst [vmem:[#allocation2 + $0x78] sm:$0xff] 0.0
  %v30 = vld [vmem:[%s1] sm:$0xff]
  %v31 = vld [vmem:[%s1 + $0x8] sm:$0xff]
  %v32 = vld [vmem:[%s1 + $0x10] sm:$0xff]
  %v33 = vld [vmem:[%s1 + $0x18] sm:$0xff]
  %v34 = vld [vmem:[%s1 + $0x20] sm:$0xff]
  %v35 = vld [vmem:[%s1 + $0x28] sm:$0xff]
  %v36 = vld [vmem:[%s1 + $0x30] sm:$0xff]
  %v37 = vld [vmem:[%s1 + $0x38] sm:$0xff]
  %v38 = vld [vmem:[%s1 + $0x40] sm:$0xff]
  %v39 = vld [vmem:[%s1 + $0x48] sm:$0xff]
  %v40 = vld [vmem:[%s1 + $0x50] sm:$0xff]
  %v41 = vld [vmem:[%s1 + $0x58] sm:$0xff]
  %v42 = vld [vmem:[%s1 + $0x60] sm:$0xff]
  %v43 = vld [vmem:[%s1 + $0x68] sm:$0xff]
  %v44 = vld [vmem:[%s1 + $0x70] sm:$0xff]
  %v45 = vld [vmem:[%s1 + $0x78] sm:$0xff]
  %vm46 = vcmask 130048
  %47 = vst.msk [vmem:[#allocation2] sm:$0xff] %vm46, %v30
  %48 = vst.msk [vmem:[#allocation2 + $0x8] sm:$0xff] %vm46, %v31
  %49 = vst.msk [vmem:[#allocation2 + $0x10] sm:$0xff] %vm46, %v32
  %50 = vst.msk [vmem:[#allocation2 + $0x18] sm:$0xff] %vm46, %v33
  %51 = vst.msk [vmem:[#allocation2 + $0x20] sm:$0xff] %vm46, %v34
  %52 = vst.msk [vmem:[#allocation2 + $0x28] sm:$0xff] %vm46, %v35
  %53 = vst.msk [vmem:[#allocation2 + $0x30] sm:$0xff] %vm46, %v36
  %54 = vst.msk [vmem:[#allocation2 + $0x38] sm:$0xff] %vm46, %v37
  %55 = vst.msk [vmem:[#allocation2 + $0x40] sm:$0xff] %vm46, %v38
  %56 = vst.msk [vmem:[#allocation2 + $0x48] sm:$0xff] %vm46, %v39
  %57 = vst.msk [vmem:[#allocation2 + $0x50] sm:$0xff] %vm46, %v40
  %58 = vst.msk [vmem:[#allocation2 + $0x58] sm:$0xff] %vm46, %v41
  %59 = vst.msk [vmem:[#allocation2 + $0x60] sm:$0xff] %vm46, %v42
  %60 = vst.msk [vmem:[#allocation2 + $0x68] sm:$0xff] %vm46, %v43
  %61 = vst.msk [vmem:[#allocation2 + $0x70] sm:$0xff] %vm46, %v44
  %62 = vst.msk [vmem:[#allocation2 + $0x78] sm:$0xff] %vm46, %v45
  %v63 = vld [vmem:[%s0] sm:$0xff]
  %v64 = vld [vmem:[%s0 + $0x8] sm:$0xff]
  %v65 = vld [vmem:[%s0 + $0x10] sm:$0xff]
  %v66 = vld [vmem:[%s0 + $0x18] sm:$0xff]
  %v67 = vld [vmem:[%s0 + $0x20] sm:$0xff]
  %v68 = vld [vmem:[%s0 + $0x28] sm:$0xff]
  %v69 = vld [vmem:[%s0 + $0x30] sm:$0xff]
  %v70 = vld [vmem:[%s0 + $0x38] sm:$0xff]
  %v71 = vld [vmem:[%s0 + $0x40] sm:$0xff]
  %v72 = vld [vmem:[%s0 + $0x48] sm:$0xff]
  %v73 = vld [vmem:[%s0 + $0x50] sm:$0xff]
  %v74 = vld [vmem:[%s0 + $0x58] sm:$0xff]
  %v75 = vld [vmem:[%s0 + $0x60] sm:$0xff]
  %v76 = vld [vmem:[%s0 + $0x68] sm:$0xff]
  %v77 = vld [vmem:[%s0 + $0x70] sm:$0xff]
  %v78 = vld [vmem:[%s0 + $0x78] sm:$0xff]
  %79 = vmatprep.subr.mxu0 0.0
  %80 = vmatpush1.msra.mxu0 %v30
  %81 = vmatprep.subr.mxu0 0.0
  %82 = vmatpush1.msra.mxu0 %v31
  %83 = vmatprep.subr.mxu0 0.0
  %84 = vmatpush1.msra.mxu0 %v32
  %85 = vmatprep.subr.mxu0 0.0
  %86 = vmatpush1.msra.mxu0 %v33
  %87 = vmatprep.subr.mxu0 0.0
  %88 = vmatpush1.msra.mxu0 %v34
  %89 = vmatprep.subr.mxu0 0.0
  %90 = vmatpush1.msra.mxu0 %v35
  %91 = vmatprep.subr.mxu0 0.0
  %92 = vmatpush1.msra.mxu0 %v36
  %93 = vmatprep.subr.mxu0 0.0
  %94 = vmatpush1.msra.mxu0 %v37
  %95 = vmatprep.subr.mxu0 0.0
  %96 = vmatpush1.msra.mxu0 %v38
  %97 = vmatprep.subr.mxu0 0.0
  %98 = vmatpush1.msra.mxu0 %v39
  %99 = vmatprep.subr.mxu0 0.0
  %100 = vmatpush1.msra.mxu0 %v40
  %101 = vmatprep.subr.mxu0 0.0
  %102 = vmatpush1.msra.mxu0 %v41
  %103 = vmatprep.subr.mxu0 0.0
  %104 = vmatpush1.msra.mxu0 %v42
  %105 = vmatprep.subr.mxu0 0.0
  %106 = vmatpush1.msra.mxu0 %v43
  %107 = vmatprep.subr.mxu0 0.0
  %108 = vmatpush1.msra.mxu0 %v44
  %109 = vmatprep.subr.mxu0 0.0
  %110 = vmatpush1.msra.mxu0 %v45
  %111 = vmatprep.subr.mxu0 0.0
  %112 = vmatpush1.msra.mxu0 0.0
  %113 = vmatprep.subr.mxu0 0.0
  %114 = vmatpush1.msra.mxu0 0.0
  %115 = vmatprep.subr.mxu0 0.0
  %116 = vmatpush1.msra.mxu0 0.0
  %117 = vmatprep.subr.mxu0 0.0
  %118 = vmatpush1.msra.mxu0 0.0
  %119 = vmatprep.subr.mxu0 0.0
  %120 = vmatpush1.msra.mxu0 0.0
  %121 = vmatprep.subr.mxu0 0.0
  %122 = vmatpush1.msra.mxu0 0.0
  %123 = vmatprep.subr.mxu0 0.0
  %124 = vmatpush1.msra.mxu0 0.0
  %125 = vmatprep.subr.mxu0 0.0
  %126 = vmatpush1.msra.mxu0 0.0
  %127 = vmatprep.subr.mxu0 0.0
  %128 = vmatpush1.msra.mxu0 0.0
  %129 = vmatprep.subr.mxu0 0.0
  %130 = vmatpush1.msra.mxu0 0.0
  %131 = vmatprep.subr.mxu0 0.0
  %132 = vmatpush1.msra.mxu0 0.0
  %133 = vmatprep.subr.mxu0 0.0
  %134 = vmatpush1.msra.mxu0 0.0
  %135 = vmatprep.subr.mxu0 0.0
  %136 = vmatpush1.msra.mxu0 0.0
  %137 = vmatprep.subr.mxu0 0.0
  %138 = vmatpush1.msra.mxu0 0.0
  %139 = vmatprep.subr.mxu0 0.0
  %140 = vmatpush1.msra.mxu0 0.0
  %141 = vmatprep.subr.mxu0 0.0
  %142 = vmatpush1.msra.mxu0 0.0
  %143 = vmatprep.mubr.f32.mxu0 0.0
  %144 = vmatmul.mubr.f32.gmra.mrb[0].mxu0 %v63
  %v145 = vpop.f32.mrb[0].mxu0
  %v146 = vadd.f32 0.0, %v145
  %v147 = vpop.f32.mrb[0].mxu0
  %148 = vmatprep.mubr.f32.mxu0 0.0
  %149 = vmatmul.mubr.f32.gmra.mrb[0].mxu0 %v64
  %v150 = vpop.f32.mrb[0].mxu0
  %v151 = vadd.f32 0.0, %v150
  %v152 = vpop.f32.mrb[0].mxu0
  %153 = vmatprep.mubr.f32.mxu0 0.0
  %154 = vmatmul.mubr.f32.gmra.mrb[0].mxu0 %v65
  %v155 = vpop.f32.mrb[0].mxu0
  %v156 = vadd.f32 0.0, %v155
  %v157 = vpop.f32.mrb[0].mxu0
  %158 = vmatprep.mubr.f32.mxu0 0.0
  %159 = vmatmul.mubr.f32.gmra.mrb[0].mxu0 %v66
  %v160 = vpop.f32.mrb[0].mxu0
  %v161 = vadd.f32 0.0, %v160
  %v162 = vpop.f32.mrb[0].mxu0
  %163 = vmatprep.mubr.f32.mxu0 0.0
  %164 = vmatmul.mubr.f32.gmra.mrb[0].mxu0 %v67
  %v165 = vpop.f32.mrb[0].mxu0
  %v166 = vadd.f32 0.0, %v165
  %v167 = vpop.f32.mrb[0].mxu0
  %168 = vmatprep.mubr.f32.mxu0 0.0
  %169 = vmatmul.mubr.f32.gmra.mrb[0].mxu0 %v68
  %v170 = vpop.f32.mrb[0].mxu0
  %v171 = vadd.f32 0.0, %v170
  %v172 = vpop.f32.mrb[0].mxu0
  %173 = vmatprep.mubr.f32.mxu0 0.0
  %174 = vmatmul.mubr.f32.gmra.mrb[0].mxu0 %v69
  %v175 = vpop.f32.mrb[0].mxu0
  %v176 = vadd.f32 0.0, %v175
  %v177 = vpop.f32.mrb[0].mxu0
  %178 = vmatprep.mubr.f32.mxu0 0.0
  %179 = vmatmul.mubr.f32.gmra.mrb[0].mxu0 %v70
  %v180 = vpop.f32.mrb[0].mxu0
  %v181 = vadd.f32 0.0, %v180
  %v182 = vpop.f32.mrb[0].mxu0
  %183 = vmatprep.mubr.f32.mxu0 0.0
  %184 = vmatmul.mubr.f32.gmra.mrb[0].mxu0 %v71
  %v185 = vpop.f32.mrb[0].mxu0
  %v186 = vadd.f32 0.0, %v185
  %v187 = vpop.f32.mrb[0].mxu0
  %188 = vmatprep.mubr.f32.mxu0 0.0
  %189 = vmatmul.mubr.f32.gmra.mrb[0].mxu0 %v72
  %v190 = vpop.f32.mrb[0].mxu0
  %v191 = vadd.f32 0.0, %v190
  %v192 = vpop.f32.mrb[0].mxu0
  %193 = vmatprep.mubr.f32.mxu0 0.0
  %194 = vmatmul.mubr.f32.gmra.mrb[0].mxu0 %v73
  %v195 = vpop.f32.mrb[0].mxu0
  %v196 = vadd.f32 0.0, %v195
  %v197 = vpop.f32.mrb[0].mxu0
  %198 = vmatprep.mubr.f32.mxu0 0.0
  %199 = vmatmul.mubr.f32.gmra.mrb[0].mxu0 %v74
  %v200 = vpop.f32.mrb[0].mxu0
  %v201 = vadd.f32 0.0, %v200
  %v202 = vpop.f32.mrb[0].mxu0
  %203 = vmatprep.mubr.f32.mxu0 0.0
  %204 = vmatmul.mubr.f32.gmra.mrb[0].mxu0 %v75
  %v205 = vpop.f32.mrb[0].mxu0
  %v206 = vadd.f32 0.0, %v205
  %v207 = vpop.f32.mrb[0].mxu0
  %208 = vmatprep.mubr.f32.mxu0 0.0
  %209 = vmatmul.mubr.f32.gmra.mrb[0].mxu0 %v76
  %v210 = vpop.f32.mrb[0].mxu0
  %v211 = vadd.f32 0.0, %v210
  %v212 = vpop.f32.mrb[0].mxu0
  %213 = vmatprep.mubr.f32.mxu0 0.0
  %214 = vmatmul.mubr.f32.gmra.mrb[0].mxu0 %v77
  %v215 = vpop.f32.mrb[0].mxu0
  %v216 = vadd.f32 0.0, %v215
  %v217 = vpop.f32.mrb[0].mxu0
  %218 = vmatprep.mubr.f32.mxu0 0.0
  %219 = vmatmul.mubr.f32.gmra.mrb[0].mxu0 %v78
  %v220 = vpop.f32.mrb[0].mxu0
  %v221 = vadd.f32 0.0, %v220
  %v222 = vpop.f32.mrb[0].mxu0
  %223 = vdwg.mxu0
  %240 = vrot.lane.b32.xlu0 %v146, 16
  %v241 = vpop.permute.xlu0 %240
  %242 = vrot.lane.b32.xlu0 %v151, 16
  %v243 = vpop.permute.xlu0 %242
  %244 = vrot.lane.b32.xlu0 %v156, 16
  %v245 = vpop.permute.xlu0 %244
  %246 = vrot.lane.b32.xlu0 %v161, 16
  %v247 = vpop.permute.xlu0 %246
  %248 = vrot.lane.b32.xlu0 %v166, 16
  %v249 = vpop.permute.xlu0 %248
  %250 = vrot.lane.b32.xlu0 %v171, 16
  %v251 = vpop.permute.xlu0 %250
  %252 = vrot.lane.b32.xlu0 %v176, 16
  %v253 = vpop.permute.xlu0 %252
  %254 = vrot.lane.b32.xlu0 %v181, 16
  %v255 = vpop.permute.xlu0 %254
  %256 = vrot.lane.b32.xlu0 %v186, 16
  %v257 = vpop.permute.xlu0 %256
  %258 = vrot.lane.b32.xlu0 %v191, 16
  %v259 = vpop.permute.xlu0 %258
  %260 = vrot.lane.b32.xlu0 %v196, 16
  %v261 = vpop.permute.xlu0 %260
  %262 = vrot.lane.b32.xlu0 %v201, 16
  %v263 = vpop.permute.xlu0 %262
  %264 = vrot.lane.b32.xlu0 %v206, 16
  %v265 = vpop.permute.xlu0 %264
  %266 = vrot.lane.b32.xlu0 %v211, 16
  %v267 = vpop.permute.xlu0 %266
  %268 = vrot.lane.b32.xlu0 %v216, 16
  %v269 = vpop.permute.xlu0 %268
  %270 = vrot.lane.b32.xlu0 %v221, 16
  %v271 = vpop.permute.xlu0 %270
  %vm288 = vcmask 261248
  %289 = vst.msk [vmem:[#allocation2] sm:$0xff] %vm288, %v241
  %290 = vst.msk [vmem:[#allocation2 + $0x8] sm:$0xff] %vm288, %v243
  %291 = vst.msk [vmem:[#allocation2 + $0x10] sm:$0xff] %vm288, %v245
  %292 = vst.msk [vmem:[#allocation2 + $0x18] sm:$0xff] %vm288, %v247
  %293 = vst.msk [vmem:[#allocation2 + $0x20] sm:$0xff] %vm288, %v249
  %294 = vst.msk [vmem:[#allocation2 + $0x28] sm:$0xff] %vm288, %v251
  %295 = vst.msk [vmem:[#allocation2 + $0x30] sm:$0xff] %vm288, %v253
  %296 = vst.msk [vmem:[#allocation2 + $0x38] sm:$0xff] %vm288, %v255
  %297 = vst.msk [vmem:[#allocation2 + $0x40] sm:$0xff] %vm288, %v257
  %298 = vst.msk [vmem:[#allocation2 + $0x48] sm:$0xff] %vm288, %v259
  %299 = vst.msk [vmem:[#allocation2 + $0x50] sm:$0xff] %vm288, %v261
  %300 = vst.msk [vmem:[#allocation2 + $0x58] sm:$0xff] %vm288, %v263
  %301 = vst.msk [vmem:[#allocation2 + $0x60] sm:$0xff] %vm288, %v265
  %302 = vst.msk [vmem:[#allocation2 + $0x68] sm:$0xff] %vm288, %v267
  %303 = vst.msk [vmem:[#allocation2 + $0x70] sm:$0xff] %vm288, %v269
  %304 = vst.msk [vmem:[#allocation2 + $0x78] sm:$0xff] %vm288, %v271
  %v305 = vld [vmem:[%s0] sm:$0xff]
  %v306 = vld [vmem:[%s0 + $0x8] sm:$0xff]
  %v307 = vld [vmem:[%s0 + $0x10] sm:$0xff]
  %v308 = vld [vmem:[%s0 + $0x18] sm:$0xff]
  %v309 = vld [vmem:[%s0 + $0x20] sm:$0xff]
  %v310 = vld [vmem:[%s0 + $0x28] sm:$0xff]
  %v311 = vld [vmem:[%s0 + $0x30] sm:$0xff]
  %v312 = vld [vmem:[%s0 + $0x38] sm:$0xff]
  %v313 = vld [vmem:[%s0 + $0x40] sm:$0xff]
  %v314 = vld [vmem:[%s0 + $0x48] sm:$0xff]
  %v315 = vld [vmem:[%s0 + $0x50] sm:$0xff]
  %v316 = vld [vmem:[%s0 + $0x58] sm:$0xff]
  %v317 = vld [vmem:[%s0 + $0x60] sm:$0xff]
  %v318 = vld [vmem:[%s0 + $0x68] sm:$0xff]
  %v319 = vld [vmem:[%s0 + $0x70] sm:$0xff]
  %v320 = vld [vmem:[%s0 + $0x78] sm:$0xff]
  %321 = vmatprep.subr.mxu0 0.0
  %322 = vmatpush1.msra.mxu0 %v146
  %323 = vmatprep.subr.mxu0 0.0
  %324 = vmatpush1.msra.mxu0 %v151
  %325 = vmatprep.subr.mxu0 0.0
  %326 = vmatpush1.msra.mxu0 %v156
  %327 = vmatprep.subr.mxu0 0.0
  %328 = vmatpush1.msra.mxu0 %v161
  %329 = vmatprep.subr.mxu0 0.0
  %330 = vmatpush1.msra.mxu0 %v166
  %331 = vmatprep.subr.mxu0 0.0
  %332 = vmatpush1.msra.mxu0 %v171
  %333 = vmatprep.subr.mxu0 0.0
  %334 = vmatpush1.msra.mxu0 %v176
  %335 = vmatprep.subr.mxu0 0.0
  %336 = vmatpush1.msra.mxu0 %v181
  %337 = vmatprep.subr.mxu0 0.0
  %338 = vmatpush1.msra.mxu0 %v186
  %339 = vmatprep.subr.mxu0 0.0
  %340 = vmatpush1.msra.mxu0 %v191
  %341 = vmatprep.subr.mxu0 0.0
  %342 = vmatpush1.msra.mxu0 %v196
  %343 = vmatprep.subr.mxu0 0.0
  %344 = vmatpush1.msra.mxu0 %v201
  %345 = vmatprep.subr.mxu0 0.0
  %346 = vmatpush1.msra.mxu0 %v206
  %347 = vmatprep.subr.mxu0 0.0
  %348 = vmatpush1.msra.mxu0 %v211
  %349 = vmatprep.subr.mxu0 0.0
  %350 = vmatpush1.msra.mxu0 %v216
  %351 = vmatprep.subr.mxu0 0.0
  %352 = vmatpush1.msra.mxu0 %v221
  %353 = vmatprep.subr.mxu0 0.0
  %354 = vmatpush1.msra.mxu0 0.0
  %355 = vmatprep.subr.mxu0 0.0
  %356 = vmatpush1.msra.mxu0 0.0
  %357 = vmatprep.subr.mxu0 0.0
  %358 = vmatpush1.msra.mxu0 0.0
  %359 = vmatprep.subr.mxu0 0.0
  %360 = vmatpush1.msra.mxu0 0.0
  %361 = vmatprep.subr.mxu0 0.0
  %362 = vmatpush1.msra.mxu0 0.0
  %363 = vmatprep.subr.mxu0 0.0
  %364 = vmatpush1.msra.mxu0 0.0
  %365 = vmatprep.subr.mxu0 0.0
  %366 = vmatpush1.msra.mxu0 0.0
  %367 = vmatprep.subr.mxu0 0.0
  %368 = vmatpush1.msra.mxu0 0.0
  %369 = vmatprep.subr.mxu0 0.0
  %370 = vmatpush1.msra.mxu0 0.0
  %371 = vmatprep.subr.mxu0 0.0
  %372 = vmatpush1.msra.mxu0 0.0
  %373 = vmatprep.subr.mxu0 0.0
  %374 = vmatpush1.msra.mxu0 0.0
  %375 = vmatprep.subr.mxu0 0.0
  %376 = vmatpush1.msra.mxu0 0.0
  %377 = vmatprep.subr.mxu0 0.0
  %378 = vmatpush1.msra.mxu0 0.0
  %379 = vmatprep.subr.mxu0 0.0
  %380 = vmatpush1.msra.mxu0 0.0
  %381 = vmatprep.subr.mxu0 0.0
  %382 = vmatpush1.msra.mxu0 0.0
  %383 = vmatprep.subr.mxu0 0.0
  %384 = vmatpush1.msra.mxu0 0.0
  %385 = vmatprep.mubr.f32.mxu0 0.0
  %386 = vmatmul.mubr.f32.gmra.mrb[0].mxu0 %v305
  %v387 = vpop.f32.mrb[0].mxu0
  %v388 = vadd.f32 0.0, %v387
  %v389 = vpop.f32.mrb[0].mxu0
  %390 = vmatprep.mubr.f32.mxu0 0.0
  %391 = vmatmul.mubr.f32.gmra.mrb[0].mxu0 %v306
  %v392 = vpop.f32.mrb[0].mxu0
  %v393 = vadd.f32 0.0, %v392
  %v394 = vpop.f32.mrb[0].mxu0
  %395 = vmatprep.mubr.f32.mxu0 0.0
  %396 = vmatmul.mubr.f32.gmra.mrb[0].mxu0 %v307
  %v397 = vpop.f32.mrb[0].mxu0
  %v398 = vadd.f32 0.0, %v397
  %v399 = vpop.f32.mrb[0].mxu0
  %400 = vmatprep.mubr.f32.mxu0 0.0
  %401 = vmatmul.mubr.f32.gmra.mrb[0].mxu0 %v308
  %v402 = vpop.f32.mrb[0].mxu0
  %v403 = vadd.f32 0.0, %v402
  %v404 = vpop.f32.mrb[0].mxu0
  %405 = vmatprep.mubr.f32.mxu0 0.0
  %406 = vmatmul.mubr.f32.gmra.mrb[0].mxu0 %v309
  %v407 = vpop.f32.mrb[0].mxu0
  %v408 = vadd.f32 0.0, %v407
  %v409 = vpop.f32.mrb[0].mxu0
  %410 = vmatprep.mubr.f32.mxu0 0.0
  %411 = vmatmul.mubr.f32.gmra.mrb[0].mxu0 %v310
  %v412 = vpop.f32.mrb[0].mxu0
  %v413 = vadd.f32 0.0, %v412
  %v414 = vpop.f32.mrb[0].mxu0
  %415 = vmatprep.mubr.f32.mxu0 0.0
  %416 = vmatmul.mubr.f32.gmra.mrb[0].mxu0 %v311
  %v417 = vpop.f32.mrb[0].mxu0
  %v418 = vadd.f32 0.0, %v417
  %v419 = vpop.f32.mrb[0].mxu0
  %420 = vmatprep.mubr.f32.mxu0 0.0
  %421 = vmatmul.mubr.f32.gmra.mrb[0].mxu0 %v312
  %v422 = vpop.f32.mrb[0].mxu0
  %v423 = vadd.f32 0.0, %v422
  %v424 = vpop.f32.mrb[0].mxu0
  %425 = vmatprep.mubr.f32.mxu0 0.0
  %426 = vmatmul.mubr.f32.gmra.mrb[0].mxu0 %v313
  %v427 = vpop.f32.mrb[0].mxu0
  %v428 = vadd.f32 0.0, %v427
  %v429 = vpop.f32.mrb[0].mxu0
  %430 = vmatprep.mubr.f32.mxu0 0.0
  %431 = vmatmul.mubr.f32.gmra.mrb[0].mxu0 %v314
  %v432 = vpop.f32.mrb[0].mxu0
  %v433 = vadd.f32 0.0, %v432
  %v434 = vpop.f32.mrb[0].mxu0
  %435 = vmatprep.mubr.f32.mxu0 0.0
  %436 = vmatmul.mubr.f32.gmra.mrb[0].mxu0 %v315
  %v437 = vpop.f32.mrb[0].mxu0
  %v438 = vadd.f32 0.0, %v437
  %v439 = vpop.f32.mrb[0].mxu0
  %440 = vmatprep.mubr.f32.mxu0 0.0
  %441 = vmatmul.mubr.f32.gmra.mrb[0].mxu0 %v316
  %v442 = vpop.f32.mrb[0].mxu0
  %v443 = vadd.f32 0.0, %v442
  %v444 = vpop.f32.mrb[0].mxu0
  %445 = vmatprep.mubr.f32.mxu0 0.0
  %446 = vmatmul.mubr.f32.gmra.mrb[0].mxu0 %v317
  %v447 = vpop.f32.mrb[0].mxu0
  %v448 = vadd.f32 0.0, %v447
  %v449 = vpop.f32.mrb[0].mxu0
  %450 = vmatprep.mubr.f32.mxu0 0.0
  %451 = vmatmul.mubr.f32.gmra.mrb[0].mxu0 %v318
  %v452 = vpop.f32.mrb[0].mxu0
  %v453 = vadd.f32 0.0, %v452
  %v454 = vpop.f32.mrb[0].mxu0
  %455 = vmatprep.mubr.f32.mxu0 0.0
  %456 = vmatmul.mubr.f32.gmra.mrb[0].mxu0 %v319
  %v457 = vpop.f32.mrb[0].mxu0
  %v458 = vadd.f32 0.0, %v457
  %v459 = vpop.f32.mrb[0].mxu0
  %460 = vmatprep.mubr.f32.mxu0 0.0
  %461 = vmatmul.mubr.f32.gmra.mrb[0].mxu0 %v320
  %v462 = vpop.f32.mrb[0].mxu0
  %v463 = vadd.f32 0.0, %v462
  %v464 = vpop.f32.mrb[0].mxu0
  %465 = vdwg.mxu0
  %482 = vrot.lane.b32.xlu0 %v388, 32
  %v483 = vpop.permute.xlu0 %482
  %484 = vrot.lane.b32.xlu0 %v393, 32
  %v485 = vpop.permute.xlu0 %484
  %486 = vrot.lane.b32.xlu0 %v398, 32
  %v487 = vpop.permute.xlu0 %486
  %488 = vrot.lane.b32.xlu0 %v403, 32
  %v489 = vpop.permute.xlu0 %488
  %490 = vrot.lane.b32.xlu0 %v408, 32
  %v491 = vpop.permute.xlu0 %490
  %492 = vrot.lane.b32.xlu0 %v413, 32
  %v493 = vpop.permute.xlu0 %492
  %494 = vrot.lane.b32.xlu0 %v418, 32
  %v495 = vpop.permute.xlu0 %494
  %496 = vrot.lane.b32.xlu0 %v423, 32
  %v497 = vpop.permute.xlu0 %496
  %498 = vrot.lane.b32.xlu0 %v428, 32
  %v499 = vpop.permute.xlu0 %498
  %500 = vrot.lane.b32.xlu0 %v433, 32
  %v501 = vpop.permute.xlu0 %500
  %502 = vrot.lane.b32.xlu0 %v438, 32
  %v503 = vpop.permute.xlu0 %502
  %504 = vrot.lane.b32.xlu0 %v443, 32
  %v505 = vpop.permute.xlu0 %504
  %506 = vrot.lane.b32.xlu0 %v448, 32
  %v507 = vpop.permute.xlu0 %506
  %508 = vrot.lane.b32.xlu0 %v453, 32
  %v509 = vpop.permute.xlu0 %508
  %510 = vrot.lane.b32.xlu0 %v458, 32
  %v511 = vpop.permute.xlu0 %510
  %512 = vrot.lane.b32.xlu0 %v463, 32
  %v513 = vpop.permute.xlu0 %512
  %vm530 = vcmask 392448
  %531 = vst.msk [vmem:[#allocation2] sm:$0xff] %vm530, %v483
  %532 = vst.msk [vmem:[#allocation2 + $0x8] sm:$0xff] %vm530, %v485
  %533 = vst.msk [vmem:[#allocation2 + $0x10] sm:$0xff] %vm530, %v487
  %534 = vst.msk [vmem:[#allocation2 + $0x18] sm:$0xff] %vm530, %v489
  %535 = vst.msk [vmem:[#allocation2 + $0x20] sm:$0xff] %vm530, %v491
  %536 = vst.msk [vmem:[#allocation2 + $0x28] sm:$0xff] %vm530, %v493
  %537 = vst.msk [vmem:[#allocation2 + $0x30] sm:$0xff] %vm530, %v495
  %538 = vst.msk [vmem:[#allocation2 + $0x38] sm:$0xff] %vm530, %v497
  %539 = vst.msk [vmem:[#allocation2 + $0x40] sm:$0xff] %vm530, %v499
  %540 = vst.msk [vmem:[#allocation2 + $0x48] sm:$0xff] %vm530, %v501
  %541 = vst.msk [vmem:[#allocation2 + $0x50] sm:$0xff] %vm530, %v503
  %542 = vst.msk [vmem:[#allocation2 + $0x58] sm:$0xff] %vm530, %v505
  %543 = vst.msk [vmem:[#allocation2 + $0x60] sm:$0xff] %vm530, %v507
  %544 = vst.msk [vmem:[#allocation2 + $0x68] sm:$0xff] %vm530, %v509
  %545 = vst.msk [vmem:[#allocation2 + $0x70] sm:$0xff] %vm530, %v511
  %546 = vst.msk [vmem:[#allocation2 + $0x78] sm:$0xff] %vm530, %v513
  %v547 = vld [vmem:[#allocation2] sm:$0xff]
  %v548 = vld [vmem:[#allocation2 + $0x8] sm:$0xff]
  %v549 = vld [vmem:[#allocation2 + $0x10] sm:$0xff]
  %v550 = vld [vmem:[#allocation2 + $0x18] sm:$0xff]
  %v551 = vld [vmem:[#allocation2 + $0x20] sm:$0xff]
  %v552 = vld [vmem:[#allocation2 + $0x28] sm:$0xff]
  %v553 = vld [vmem:[#allocation2 + $0x30] sm:$0xff]
  %v554 = vld [vmem:[#allocation2 + $0x38] sm:$0xff]
  %v555 = vld [vmem:[#allocation2 + $0x40] sm:$0xff]
  %v556 = vld [vmem:[#allocation2 + $0x48] sm:$0xff]
  %v557 = vld [vmem:[#allocation2 + $0x50] sm:$0xff]
  %v558 = vld [vmem:[#allocation2 + $0x58] sm:$0xff]
  %v559 = vld [vmem:[#allocation2 + $0x60] sm:$0xff]
  %v560 = vld [vmem:[#allocation2 + $0x68] sm:$0xff]
  %v561 = vld [vmem:[#allocation2 + $0x70] sm:$0xff]
  %v562 = vld [vmem:[#allocation2 + $0x78] sm:$0xff]
  %v563 = vld [vmem:[%s2] sm:$0xff]
  %v564 = vld [vmem:[%s2 + $0x8] sm:$0xff]
  %v565 = vld [vmem:[%s2 + $0x10] sm:$0xff]
  %v566 = vld [vmem:[%s2 + $0x18] sm:$0xff]
  %v567 = vld [vmem:[%s2 + $0x20] sm:$0xff]
  %v568 = vld [vmem:[%s2 + $0x28] sm:$0xff]
  %v569 = vld [vmem:[%s2 + $0x30] sm:$0xff]
  %v570 = vld [vmem:[%s2 + $0x38] sm:$0xff]
  %v571 = vld [vmem:[%s2 + $0x40] sm:$0xff]
  %v572 = vld [vmem:[%s2 + $0x48] sm:$0xff]
  %v573 = vld [vmem:[%s2 + $0x50] sm:$0xff]
  %v574 = vld [vmem:[%s2 + $0x58] sm:$0xff]
  %v575 = vld [vmem:[%s2 + $0x60] sm:$0xff]
  %v576 = vld [vmem:[%s2 + $0x68] sm:$0xff]
  %v577 = vld [vmem:[%s2 + $0x70] sm:$0xff]
  %v578 = vld [vmem:[%s2 + $0x78] sm:$0xff]
  %579 = vmatprep.subr.mxu0 0.0
  %580 = vmatpush1.msra.mxu0 %v563
  %581 = vmatprep.subr.mxu0 0.0
  %582 = vmatpush1.msra.mxu0 %v564
  %583 = vmatprep.subr.mxu0 0.0
  %584 = vmatpush1.msra.mxu0 %v565
  %585 = vmatprep.subr.mxu0 0.0
  %586 = vmatpush1.msra.mxu0 %v566
  %587 = vmatprep.subr.mxu0 0.0
  %588 = vmatpush1.msra.mxu0 %v567
  %589 = vmatprep.subr.mxu0 0.0
  %590 = vmatpush1.msra.mxu0 %v568
  %591 = vmatprep.subr.mxu0 0.0
  %592 = vmatpush1.msra.mxu0 %v569
  %593 = vmatprep.subr.mxu0 0.0
  %594 = vmatpush1.msra.mxu0 %v570
  %595 = vmatprep.subr.mxu0 0.0
  %596 = vmatpush1.msra.mxu0 %v571
  %597 = vmatprep.subr.mxu0 0.0
  %598 = vmatpush1.msra.mxu0 %v572
  %599 = vmatprep.subr.mxu0 0.0
  %600 = vmatpush1.msra.mxu0 %v573
  %601 = vmatprep.subr.mxu0 0.0
  %602 = vmatpush1.msra.mxu0 %v574
  %603 = vmatprep.subr.mxu0 0.0
  %604 = vmatpush1.msra.mxu0 %v575
  %605 = vmatprep.subr.mxu0 0.0
  %606 = vmatpush1.msra.mxu0 %v576
  %607 = vmatprep.subr.mxu0 0.0
  %608 = vmatpush1.msra.mxu0 %v577
  %609 = vmatprep.subr.mxu0 0.0
  %610 = vmatpush1.msra.mxu0 %v578
  %611 = vmatprep.subr.mxu0 0.0
  %612 = vmatpush1.msra.mxu0 0.0
  %613 = vmatprep.subr.mxu0 0.0
  %614 = vmatpush1.msra.mxu0 0.0
  %615 = vmatprep.subr.mxu0 0.0
  %616 = vmatpush1.msra.mxu0 0.0
  %617 = vmatprep.subr.mxu0 0.0
  %618 = vmatpush1.msra.mxu0 0.0
  %619 = vmatprep.subr.mxu0 0.0
  %620 = vmatpush1.msra.mxu0 0.0
  %621 = vmatprep.subr.mxu0 0.0
  %622 = vmatpush1.msra.mxu0 0.0
  %623 = vmatprep.subr.mxu0 0.0
  %624 = vmatpush1.msra.mxu0 0.0
  %625 = vmatprep.subr.mxu0 0.0
  %626 = vmatpush1.msra.mxu0 0.0
  %627 = vmatprep.subr.mxu0 0.0
  %628 = vmatpush1.msra.mxu0 0.0
  %629 = vmatprep.subr.mxu0 0.0
  %630 = vmatpush1.msra.mxu0 0.0
  %631 = vmatprep.subr.mxu0 0.0
  %632 = vmatpush1.msra.mxu0 0.0
  %633 = vmatprep.subr.mxu0 0.0
  %634 = vmatpush1.msra.mxu0 0.0
  %635 = vmatprep.subr.mxu0 0.0
  %636 = vmatpush1.msra.mxu0 0.0
  %637 = vmatprep.subr.mxu0 0.0
  %638 = vmatpush1.msra.mxu0 0.0
  %639 = vmatprep.subr.mxu0 0.0
  %640 = vmatpush1.msra.mxu0 0.0
  %641 = vmatprep.subr.mxu0 0.0
  %642 = vmatpush1.msra.mxu0 0.0
  %643 = vmatprep.mubr.f32.mxu0 0.0
  %644 = vmatmul.mubr.f32.gmra.mrb[0].mxu0 %v547
  %v645 = vpop.f32.mrb[0].mxu0
  %v646 = vadd.f32 0.0, %v645
  %v647 = vpop.f32.mrb[0].mxu0
  %648 = vmatprep.mubr.f32.mxu0 0.0
  %649 = vmatmul.mubr.f32.gmra.mrb[0].mxu0 %v548
  %v650 = vpop.f32.mrb[0].mxu0
  %v651 = vadd.f32 0.0, %v650
  %v652 = vpop.f32.mrb[0].mxu0
  %653 = vmatprep.mubr.f32.mxu0 0.0
  %654 = vmatmul.mubr.f32.gmra.mrb[0].mxu0 %v549
  %v655 = vpop.f32.mrb[0].mxu0
  %v656 = vadd.f32 0.0, %v655
  %v657 = vpop.f32.mrb[0].mxu0
  %658 = vmatprep.mubr.f32.mxu0 0.0
  %659 = vmatmul.mubr.f32.gmra.mrb[0].mxu0 %v550
  %v660 = vpop.f32.mrb[0].mxu0
  %v661 = vadd.f32 0.0, %v660
  %v662 = vpop.f32.mrb[0].mxu0
  %663 = vmatprep.mubr.f32.mxu0 0.0
  %664 = vmatmul.mubr.f32.gmra.mrb[0].mxu0 %v551
  %v665 = vpop.f32.mrb[0].mxu0
  %v666 = vadd.f32 0.0, %v665
  %v667 = vpop.f32.mrb[0].mxu0
  %668 = vmatprep.mubr.f32.mxu0 0.0
  %669 = vmatmul.mubr.f32.gmra.mrb[0].mxu0 %v552
  %v670 = vpop.f32.mrb[0].mxu0
  %v671 = vadd.f32 0.0, %v670
  %v672 = vpop.f32.mrb[0].mxu0
  %673 = vmatprep.mubr.f32.mxu0 0.0
  %674 = vmatmul.mubr.f32.gmra.mrb[0].mxu0 %v553
  %v675 = vpop.f32.mrb[0].mxu0
  %v676 = vadd.f32 0.0, %v675
  %v677 = vpop.f32.mrb[0].mxu0
  %678 = vmatprep.mubr.f32.mxu0 0.0
  %679 = vmatmul.mubr.f32.gmra.mrb[0].mxu0 %v554
  %v680 = vpop.f32.mrb[0].mxu0
  %v681 = vadd.f32 0.0, %v680
  %v682 = vpop.f32.mrb[0].mxu0
  %683 = vmatprep.mubr.f32.mxu0 0.0
  %684 = vmatmul.mubr.f32.gmra.mrb[0].mxu0 %v555
  %v685 = vpop.f32.mrb[0].mxu0
  %v686 = vadd.f32 0.0, %v685
  %v687 = vpop.f32.mrb[0].mxu0
  %688 = vmatprep.mubr.f32.mxu0 0.0
  %689 = vmatmul.mubr.f32.gmra.mrb[0].mxu0 %v556
  %v690 = vpop.f32.mrb[0].mxu0
  %v691 = vadd.f32 0.0, %v690
  %v692 = vpop.f32.mrb[0].mxu0
  %693 = vmatprep.mubr.f32.mxu0 0.0
  %694 = vmatmul.mubr.f32.gmra.mrb[0].mxu0 %v557
  %v695 = vpop.f32.mrb[0].mxu0
  %v696 = vadd.f32 0.0, %v695
  %v697 = vpop.f32.mrb[0].mxu0
  %698 = vmatprep.mubr.f32.mxu0 0.0
  %699 = vmatmul.mubr.f32.gmra.mrb[0].mxu0 %v558
  %v700 = vpop.f32.mrb[0].mxu0
  %v701 = vadd.f32 0.0, %v700
  %v702 = vpop.f32.mrb[0].mxu0
  %703 = vmatprep.mubr.f32.mxu0 0.0
  %704 = vmatmul.mubr.f32.gmra.mrb[0].mxu0 %v559
  %v705 = vpop.f32.mrb[0].mxu0
  %v706 = vadd.f32 0.0, %v705
  %v707 = vpop.f32.mrb[0].mxu0
  %708 = vmatprep.mubr.f32.mxu0 0.0
  %709 = vmatmul.mubr.f32.gmra.mrb[0].mxu0 %v560
  %v710 = vpop.f32.mrb[0].mxu0
  %v711 = vadd.f32 0.0, %v710
  %v712 = vpop.f32.mrb[0].mxu0
  %713 = vmatprep.mubr.f32.mxu0 0.0
  %714 = vmatmul.mubr.f32.gmra.mrb[0].mxu0 %v561
  %v715 = vpop.f32.mrb[0].mxu0
  %v716 = vadd.f32 0.0, %v715
  %v717 = vpop.f32.mrb[0].mxu0
  %718 = vmatprep.mubr.f32.mxu0 0.0
  %719 = vmatmul.mubr.f32.gmra.mrb[0].mxu0 %v562
  %v720 = vpop.f32.mrb[0].mxu0
  %v721 = vadd.f32 0.0, %v720
  %v722 = vpop.f32.mrb[0].mxu0
  %723 = vdwg.mxu0
  %724 = vst [vmem:[%s3] sm:$0xff] %v646
  %725 = vst [vmem:[%s3 + $0x8] sm:$0xff] %v651
  %726 = vst [vmem:[%s3 + $0x10] sm:$0xff] %v656
  %727 = vst [vmem:[%s3 + $0x18] sm:$0xff] %v661
  %728 = vst [vmem:[%s3 + $0x20] sm:$0xff] %v666
  %729 = vst [vmem:[%s3 + $0x28] sm:$0xff] %v671
  %730 = vst [vmem:[%s3 + $0x30] sm:$0xff] %v676
  %731 = vst [vmem:[%s3 + $0x38] sm:$0xff] %v681
  %732 = vst [vmem:[%s3 + $0x40] sm:$0xff] %v686
  %733 = vst [vmem:[%s3 + $0x48] sm:$0xff] %v691
  %734 = vst [vmem:[%s3 + $0x50] sm:$0xff] %v696
  %735 = vst [vmem:[%s3 + $0x58] sm:$0xff] %v701
  %736 = vst [vmem:[%s3 + $0x60] sm:$0xff] %v706
  %737 = vst [vmem:[%s3 + $0x68] sm:$0xff] %v711
  %738 = vst [vmem:[%s3 + $0x70] sm:$0xff] %v716
  %739 = vst [vmem:[%s3 + $0x78] sm:$0xff] %v721
  // Predicated region
  $region14: #{_forward.1} parent=0 // pred_check
    _
  $region15: #{_forward.1} parent=0 // pred_check_branch
    %741 = sbr.rel (0) target = $region17
  $region16: #{_forward.1} parent=0 // pred_region
    _
  $region17: #{_forward.1} parent=0 // pred_fallthru
    _
  // Predicated region
  $region18: #{_forward.1} parent=0 // pred_check
    _
  $region19: #{_forward.1} parent=0 // pred_check_branch
    %743 = sbr.rel (0) target = $region21
  $region20: #{_forward.1} parent=0 // pred_region
    _
  $region21: #{_forward.1} parent=0 // pred_fallthru
    _

</llo_original>
